<compile_context>
chip_gen: v5e
topology: v5e:2x2
jax: 0.10.0
libtpu: 0.0.40
codegen_flags: <defaults>
</compile_context>

<pallas_src>
import functools

import jax
import jax.numpy as jnp
from jax.experimental import pallas as pl
from jax.experimental.pallas import tpu as pltpu


def _round_up(x, m):
    return ((x + m - 1) // m) * m


# ----------------------------- Pallas kernel -------------------------------

def _cbl_kernel(x_ref, w_ref, b_ref, o_ref, *, kh, kw, wp, l_out):
    # x_ref: (N, Cin, L_in)     f32 flat zero-padded images (channel-major)
    # w_ref: (Cout, kh*kw*Cin)  f32 3x3 weights with conv1x1 + BN scale folded
    # b_ref: (Cout, 1)          f32 folded BN bias
    # o_ref: (N, Cout, L_out)   f32, L_out % 128 == 0 (lane-dense stores)
    n = x_ref.shape[0]
    x = x_ref[...]

    # Build the (kh*kw*Cin, N*L_out) GEMM operand from the 9 static shifted
    # lane-slices of each flat image (stride==1 "flat shift" trick), with the
    # batch folded onto the lane axis.  Row order is k-major / cin-minor,
    # matching the folded weight layout.
    rows = []
    for di in range(kh):                             # static unrolled 3x3 loop
        for dj in range(kw):
            off = di * wp + dj                       # static python int
            rows.append(jnp.concatenate(
                [x[b, :, off:off + l_out] for b in range(n)], axis=1))
    stacked = jnp.concatenate(rows, axis=0)          # (kh*kw*Cin, N*L_out)

    # Single K=36 GEMM on the MXU, f32 accumulation.
    y = jnp.dot(w_ref[...], stacked, preferred_element_type=jnp.float32)
    y = y + b_ref[...]                               # f32 epilogue
    y = jnp.where(y >= 0.0, y, 0.1 * y)              # LeakyReLU(0.1)

    # Per-image slices at lane-aligned offsets -> output already NCHW-ordered.
    for b in range(n):
        o_ref[b] = y[:, b * l_out:(b + 1) * l_out]


def _cbl_pallas(xflat, wf, bias, *, kh, kw, wp, l_out):
    n, cin, l_in = xflat.shape
    cout, kk = wf.shape
    kernel = functools.partial(_cbl_kernel, kh=kh, kw=kw, wp=wp, l_out=l_out)

    flops = 2 * cout * kk * n * l_out + 3 * cout * n * l_out
    bytes_accessed = 4 * (xflat.size + wf.size + bias.size + n * cout * l_out)

    return pl.pallas_call(
        kernel,
        out_shape=jax.ShapeDtypeStruct((n, cout, l_out), jnp.float32),
        # Single invocation (no grid): whole arrays resident in VMEM
        # (working set is a few hundred KB, far below any VMEM limit).
        in_specs=[
            pl.BlockSpec(memory_space=pltpu.MemorySpace.VMEM),
            pl.BlockSpec(memory_space=pltpu.MemorySpace.VMEM),
            pl.BlockSpec(memory_space=pltpu.MemorySpace.VMEM),
        ],
        out_specs=pl.BlockSpec(memory_space=pltpu.MemorySpace.VMEM),
        cost_estimate=pl.CostEstimate(
            flops=flops, transcendentals=0, bytes_accessed=bytes_accessed),
    )(xflat, wf, bias)


# ------------------------------- Glue / wrapper -----------------------------

def cbl_forward(x_nchw, params, *, kernel_size, stride, padding, eps=1e-5):
    """Forward pass matching the PyTorch CBL module (inference-mode BN)."""
    w1, w2, gamma, beta, run_mean, run_var = params
    # TODO(synk): the flat-shift conv layout assumes stride == 1 (true for this
    # module configuration); a strided variant would need column subsampling.
    assert stride == 1, "flat-shift conv layout requires stride == 1"

    n, cin, h, w = x_nchw.shape
    kh = kw = kernel_size
    cmid = w1.shape[0]
    cout = w2.shape[0]
    hp, wp = h + 2 * padding, w + 2 * padding
    ho, wo = hp - kh + 1, wp - kw + 1

    max_off = (kh - 1) * wp + (kw - 1)
    l_out = _round_up(ho * wp, 128)          # lane-dense output column count
    # Extra zero rows at the bottom so the flattened plane covers the largest
    # shifted slice -- folded into the single spatial pad (no second flat pad).
    slack = max(l_out + max_off - hp * wp, 0)
    extra_rows = -(-slack // wp)
    l_in = (hp + extra_rows) * wp

    # One pad + one (free) reshape; no im2col in HBM, no dtype casts.
    xflat = jnp.pad(
        x_nchw,
        ((0, 0), (0, 0), (padding, padding + extra_rows), (padding, padding)),
    ).reshape(n, cin, l_in)

    # Fold conv1x1 + BatchNorm(inference) into the 3x3 weights (all f32, so
    # large BN scales do not amplify any low-precision rounding).
    scale = gamma / jnp.sqrt(run_var + eps)                   # (cout,)
    bias = beta - run_mean * scale                            # (cout,)
    w2s = scale[:, None] * w2[:, :, 0, 0]                     # (cout, cmid)
    w1r = jnp.transpose(w1, (2, 3, 0, 1)).reshape(kh * kw, cmid, cin)
    wf = jnp.einsum('om,kmi->oki', w2s, w1r).reshape(cout, kh * kw * cin)

    out_flat = _cbl_pallas(xflat, wf, bias.reshape(cout, 1),
                           kh=kh, kw=kw, wp=wp, l_out=l_out)

    # (N, Cout, L_out) -> crop the slack/padding columns -> NCHW.
    out = out_flat[:, :, :ho * wp].reshape(n, cout, ho, wp)[:, :, :, :wo]
    return out


# ------------------------------- Reference ---------------------------------

def cbl_reference(x_nchw, params, *, kernel_size, stride, padding, eps=1e-5):
    w1, w2, gamma, beta, run_mean, run_var = params
    dn = jax.lax.conv_dimension_numbers(x_nchw.shape, w1.shape,
                                        ("NCHW", "OIHW", "NCHW"))
    h = jax.lax.conv_general_dilated(x_nchw, w1, (stride, stride),
                                     [(padding, padding)] * 2,
                                     dimension_numbers=dn)
    dn2 = jax.lax.conv_dimension_numbers(h.shape, w2.shape,
                                         ("NCHW", "OIHW", "NCHW"))
    y = jax.lax.conv_general_dilated(h, w2, (1, 1), [(0, 0)] * 2,
                                     dimension_numbers=dn2)
    sc = (gamma / jnp.sqrt(run_var + eps)).reshape(1, -1, 1, 1)
    bi = (beta - run_mean * gamma / jnp.sqrt(run_var + eps)).reshape(1, -1, 1, 1)
    y = y * sc + bi
    return jnp.where(y >= 0, y, 0.1 * y)


# --------------------------------- Main -------------------------------------

if __name__ == "__main__":
    # Module config: CBL(in_channels=16, out_channels=32, kernal_size=3,
    #                    stride=1, padding=1, factor=0.25)
    in_channels, out_channels, factor = 16, 32, 0.25
    kernel_size, stride, padding = 3, 1, 1
    c_mid = round(in_channels * factor)    # 4
    c_out = round(out_channels * factor)   # 8

    key = jax.random.PRNGKey(0)
    k_x, k_w1, k_w2, k_g, k_b, k_m, k_v = jax.random.split(key, 7)

    # Input (NCHW, channels = round(in_channels*factor) = 4)
    x = jax.random.normal(k_x, (2, c_mid, 16, 16), dtype=jnp.float32)

    # Deterministic synthetic parameters (Kaiming-ish scale for convs).
    w1 = jax.random.normal(k_w1, (c_mid, c_mid, kernel_size, kernel_size),
                           dtype=jnp.float32) * 0.1
    w2 = jax.random.normal(k_w2, (c_out, c_mid, 1, 1), dtype=jnp.float32) * 0.1
    gamma = 1.0 + 0.1 * jax.random.normal(k_g, (c_out,), dtype=jnp.float32)
    beta = 0.1 * jax.random.normal(k_b, (c_out,), dtype=jnp.float32)
    run_mean = 0.1 * jax.random.normal(k_m, (c_out,), dtype=jnp.float32)
    run_var = jnp.abs(jax.random.normal(k_v, (c_out,), dtype=jnp.float32)) + 0.5

    params = (w1, w2, gamma, beta, run_mean, run_var)

    fwd = jax.jit(functools.partial(cbl_forward, kernel_size=kernel_size,
                                    stride=stride, padding=padding))
    out = fwd(x, params)
    jax.block_until_ready(out)

    ref = cbl_reference(x, params, kernel_size=kernel_size, stride=stride,
                        padding=padding)
    assert out.shape == (2, c_out, 16, 16), out.shape
    # Everything is f32 end-to-end now; only accumulation-order differences
    # remain vs. the two-conv reference.
    assert jnp.allclose(out, ref, rtol=1e-3, atol=1e-3), (
        float(jnp.max(jnp.abs(out - ref))))

    print("KERNEL_OK")
</pallas_src>

<mosaic_0001>
module attributes {stable_mosaic.version = 11 : i64} {
  func.func @_cbl_kernel(%arg0: memref<2x4x432xf32, #tpu.memory_space<vmem>>, %arg1: memref<8x36xf32, #tpu.memory_space<vmem>>, %arg2: memref<8x1xf32, #tpu.memory_space<vmem>>, %arg3: memref<2x8x384xf32, #tpu.memory_space<vmem>>) attributes {dimension_semantics = [], scalar_prefetch = 0 : i64, scratch_operands = 0 : i64, tpu.core_type = #tpu.core_type<tc>} {
    %c0 = arith.constant 0 : index
    %c0_0 = arith.constant 0 : index
    %c0_1 = arith.constant 0 : index
    %0 = vector.load %arg0[%c0, %c0_0, %c0_1] : memref<2x4x432xf32, #tpu.memory_space<vmem>>, vector<2x4x432xf32>
    %1 = vector.extract_strided_slice %0 {offsets = [0, 0, 0], sizes = [1, 4, 384], strides = [1, 1, 1]} : vector<2x4x432xf32> to vector<1x4x384xf32>
    %2 = vector.shape_cast %1 : vector<1x4x384xf32> to vector<4x384xf32>
    %3 = vector.extract_strided_slice %0 {offsets = [1, 0, 0], sizes = [1, 4, 384], strides = [1, 1, 1]} : vector<2x4x432xf32> to vector<1x4x384xf32>
    %4 = vector.shape_cast %3 : vector<1x4x384xf32> to vector<4x384xf32>
    %5 = tpu.concatenate %2, %4 in 1 : vector<4x384xf32>, vector<4x384xf32> -> vector<4x768xf32>
    %6 = vector.extract_strided_slice %0 {offsets = [0, 0, 1], sizes = [1, 4, 384], strides = [1, 1, 1]} : vector<2x4x432xf32> to vector<1x4x384xf32>
    %7 = vector.shape_cast %6 : vector<1x4x384xf32> to vector<4x384xf32>
    %8 = vector.extract_strided_slice %0 {offsets = [1, 0, 1], sizes = [1, 4, 384], strides = [1, 1, 1]} : vector<2x4x432xf32> to vector<1x4x384xf32>
    %9 = vector.shape_cast %8 : vector<1x4x384xf32> to vector<4x384xf32>
    %10 = tpu.concatenate %7, %9 in 1 : vector<4x384xf32>, vector<4x384xf32> -> vector<4x768xf32>
    %11 = vector.extract_strided_slice %0 {offsets = [0, 0, 2], sizes = [1, 4, 384], strides = [1, 1, 1]} : vector<2x4x432xf32> to vector<1x4x384xf32>
    %12 = vector.shape_cast %11 : vector<1x4x384xf32> to vector<4x384xf32>
    %13 = vector.extract_strided_slice %0 {offsets = [1, 0, 2], sizes = [1, 4, 384], strides = [1, 1, 1]} : vector<2x4x432xf32> to vector<1x4x384xf32>
    %14 = vector.shape_cast %13 : vector<1x4x384xf32> to vector<4x384xf32>
    %15 = tpu.concatenate %12, %14 in 1 : vector<4x384xf32>, vector<4x384xf32> -> vector<4x768xf32>
    %16 = vector.extract_strided_slice %0 {offsets = [0, 0, 18], sizes = [1, 4, 384], strides = [1, 1, 1]} : vector<2x4x432xf32> to vector<1x4x384xf32>
    %17 = vector.shape_cast %16 : vector<1x4x384xf32> to vector<4x384xf32>
    %18 = vector.extract_strided_slice %0 {offsets = [1, 0, 18], sizes = [1, 4, 384], strides = [1, 1, 1]} : vector<2x4x432xf32> to vector<1x4x384xf32>
    %19 = vector.shape_cast %18 : vector<1x4x384xf32> to vector<4x384xf32>
    %20 = tpu.concatenate %17, %19 in 1 : vector<4x384xf32>, vector<4x384xf32> -> vector<4x768xf32>
    %21 = vector.extract_strided_slice %0 {offsets = [0, 0, 19], sizes = [1, 4, 384], strides = [1, 1, 1]} : vector<2x4x432xf32> to vector<1x4x384xf32>
    %22 = vector.shape_cast %21 : vector<1x4x384xf32> to vector<4x384xf32>
    %23 = vector.extract_strided_slice %0 {offsets = [1, 0, 19], sizes = [1, 4, 384], strides = [1, 1, 1]} : vector<2x4x432xf32> to vector<1x4x384xf32>
    %24 = vector.shape_cast %23 : vector<1x4x384xf32> to vector<4x384xf32>
    %25 = tpu.concatenate %22, %24 in 1 : vector<4x384xf32>, vector<4x384xf32> -> vector<4x768xf32>
    %26 = vector.extract_strided_slice %0 {offsets = [0, 0, 20], sizes = [1, 4, 384], strides = [1, 1, 1]} : vector<2x4x432xf32> to vector<1x4x384xf32>
    %27 = vector.shape_cast %26 : vector<1x4x384xf32> to vector<4x384xf32>
    %28 = vector.extract_strided_slice %0 {offsets = [1, 0, 20], sizes = [1, 4, 384], strides = [1, 1, 1]} : vector<2x4x432xf32> to vector<1x4x384xf32>
    %29 = vector.shape_cast %28 : vector<1x4x384xf32> to vector<4x384xf32>
    %30 = tpu.concatenate %27, %29 in 1 : vector<4x384xf32>, vector<4x384xf32> -> vector<4x768xf32>
    %31 = vector.extract_strided_slice %0 {offsets = [0, 0, 36], sizes = [1, 4, 384], strides = [1, 1, 1]} : vector<2x4x432xf32> to vector<1x4x384xf32>
    %32 = vector.shape_cast %31 : vector<1x4x384xf32> to vector<4x384xf32>
    %33 = vector.extract_strided_slice %0 {offsets = [1, 0, 36], sizes = [1, 4, 384], strides = [1, 1, 1]} : vector<2x4x432xf32> to vector<1x4x384xf32>
    %34 = vector.shape_cast %33 : vector<1x4x384xf32> to vector<4x384xf32>
    %35 = tpu.concatenate %32, %34 in 1 : vector<4x384xf32>, vector<4x384xf32> -> vector<4x768xf32>
    %36 = vector.extract_strided_slice %0 {offsets = [0, 0, 37], sizes = [1, 4, 384], strides = [1, 1, 1]} : vector<2x4x432xf32> to vector<1x4x384xf32>
    %37 = vector.shape_cast %36 : vector<1x4x384xf32> to vector<4x384xf32>
    %38 = vector.extract_strided_slice %0 {offsets = [1, 0, 37], sizes = [1, 4, 384], strides = [1, 1, 1]} : vector<2x4x432xf32> to vector<1x4x384xf32>
    %39 = vector.shape_cast %38 : vector<1x4x384xf32> to vector<4x384xf32>
    %40 = tpu.concatenate %37, %39 in 1 : vector<4x384xf32>, vector<4x384xf32> -> vector<4x768xf32>
    %41 = vector.extract_strided_slice %0 {offsets = [0, 0, 38], sizes = [1, 4, 384], strides = [1, 1, 1]} : vector<2x4x432xf32> to vector<1x4x384xf32>
    %42 = vector.shape_cast %41 : vector<1x4x384xf32> to vector<4x384xf32>
    %43 = vector.extract_strided_slice %0 {offsets = [1, 0, 38], sizes = [1, 4, 384], strides = [1, 1, 1]} : vector<2x4x432xf32> to vector<1x4x384xf32>
    %44 = vector.shape_cast %43 : vector<1x4x384xf32> to vector<4x384xf32>
    %45 = tpu.concatenate %42, %44 in 1 : vector<4x384xf32>, vector<4x384xf32> -> vector<4x768xf32>
    %46 = tpu.concatenate %5, %10, %15, %20, %25, %30, %35, %40, %45 in 0 : vector<4x768xf32>, vector<4x768xf32>, vector<4x768xf32>, vector<4x768xf32>, vector<4x768xf32>, vector<4x768xf32>, vector<4x768xf32>, vector<4x768xf32>, vector<4x768xf32> -> vector<36x768xf32>
    %c0_2 = arith.constant 0 : index
    %c0_3 = arith.constant 0 : index
    %47 = vector.load %arg1[%c0_2, %c0_3] : memref<8x36xf32, #tpu.memory_space<vmem>>, vector<8x36xf32>
    %cst = arith.constant dense<0.000000e+00> : vector<8x768xf32>
    %48 = tpu.matmul %47, %46, %cst {dimension_numbers = #tpu.dot_dimension_numbers<[1], [0], [0], [1], [0, 0, 1, 1], [], []>} : vector<8x36xf32>, vector<36x768xf32>, vector<8x768xf32> -> vector<8x768xf32>
    %c0_4 = arith.constant 0 : index
    %c0_5 = arith.constant 0 : index
    %49 = vector.load %arg2[%c0_4, %c0_5] : memref<8x1xf32, #tpu.memory_space<vmem>>, vector<8x1xf32>
    %50 = vector.broadcast %49 : vector<8x1xf32> to vector<8x768xf32>
    %51 = arith.addf %48, %50 : vector<8x768xf32>
    %cst_6 = arith.constant 0.000000e+00 : f32
    %52 = vector.broadcast %cst_6 : f32 to vector<8x768xf32>
    %53 = arith.cmpf oge, %51, %52 : vector<8x768xf32>
    %cst_7 = arith.constant 1.000000e-01 : f32
    %54 = vector.broadcast %cst_7 : f32 to vector<8x768xf32>
    %55 = arith.mulf %54, %51 : vector<8x768xf32>
    %56 = arith.select %53, %51, %55 : vector<8x768xi1>, vector<8x768xf32>
    %57 = vector.extract_strided_slice %56 {offsets = [0, 0], sizes = [8, 384], strides = [1, 1]} : vector<8x768xf32> to vector<8x384xf32>
    %c0_8 = arith.constant 0 : index
    %c0_9 = arith.constant 0 : index
    %c0_10 = arith.constant 0 : index
    %58 = vector.load %arg3[%c0_8, %c0_9, %c0_10] : memref<2x8x384xf32, #tpu.memory_space<vmem>>, vector<1x8x384xf32>
    %59 = vector.shape_cast %58 : vector<1x8x384xf32> to vector<8x384xf32>
    %60 = vector.shape_cast %57 : vector<8x384xf32> to vector<1x8x384xf32>
    tpu.vector_store %arg3[%c0_8, %c0_9, %c0_10], %60 {strides = array<i32>} : memref<2x8x384xf32, #tpu.memory_space<vmem>>, vector<1x8x384xf32>,
    %61 = vector.extract_strided_slice %56 {offsets = [0, 384], sizes = [8, 384], strides = [1, 1]} : vector<8x768xf32> to vector<8x384xf32>
    %c1 = arith.constant 1 : index
    %c0_11 = arith.constant 0 : index
    %c0_12 = arith.constant 0 : index
    %62 = vector.load %arg3[%c1, %c0_11, %c0_12] : memref<2x8x384xf32, #tpu.memory_space<vmem>>, vector<1x8x384xf32>
    %63 = vector.shape_cast %62 : vector<1x8x384xf32> to vector<8x384xf32>
    %64 = vector.shape_cast %61 : vector<8x384xf32> to vector<1x8x384xf32>
    tpu.vector_store %arg3[%c1, %c0_11, %c0_12], %64 {strides = array<i32>} : memref<2x8x384xf32, #tpu.memory_space<vmem>>, vector<1x8x384xf32>,
    return
  }
}

</mosaic_0001>

<llo_original>
// kernel: cbl_forward.1
$region0: #{cbl_forward.1}
  #allocation0 [shape = 'u32[]', space=smem, size = 0x4, offset = 0x4, fixed_abs, tag = 'smem constant byte address 0x4 - core index']
  #allocation1 [shape = 'u32[72,128]{1,0:T(1,128)}', space=vmem, size = 0x9000, scoped, tag = 'internal scratch']
  %s0 = inlined_call_operand.vmem [shape: f32[2,4,432], index: 0, kind: input, shape index: {}]
  %s1 = inlined_call_operand.vmem [shape: f32[8,36], index: 1, kind: input, shape index: {}]
  %s2 = inlined_call_operand.vmem [shape: f32[8,1], index: 2, kind: input, shape index: {}]
  %s3 = inlined_call_operand.vmem [shape: f32[2,8,384], index: 3, kind: output, shape index: {}]
  %s4 = sld [smem:[#allocation0]]
  $region22: #{cbl_forward.1} parent=0
    _
  %s6 = ssub.s32 1, %s4
  %s7 = scalar_select 0, %s6, %s4
  // Predicated region
  $region2: #{cbl_forward.1} parent=0 // pred_check
    _
  $region3: #{cbl_forward.1} parent=0 // pred_check_branch
    %9 = sbr.rel (0) target = $region5
  $region4: #{cbl_forward.1} parent=0 // pred_region
    _
  $region5: #{cbl_forward.1} parent=0 // pred_fallthru
    _
  // Predicated region
  $region6: #{cbl_forward.1} parent=0 // pred_check
    _
  $region7: #{cbl_forward.1} parent=0 // pred_check_branch
    %11 = sbr.rel (0) target = $region9
  $region8: #{cbl_forward.1} parent=0 // pred_region
    _
  $region9: #{cbl_forward.1} parent=0 // pred_fallthru
    _
  // Predicated region
  $region10: #{cbl_forward.1} parent=0 // pred_check
    _
  $region11: #{cbl_forward.1} parent=0 // pred_check_branch
    %13 = sbr.rel (0) target = $region13
  $region12: #{cbl_forward.1} parent=0 // pred_region
    _
  $region13: #{cbl_forward.1} parent=0 // pred_fallthru
    _
  %v14 = vld [vmem:[%s0] sm:$0xff]
  %v15 = vld [vmem:[%s0 + $0x8] sm:$0xff]
  %v16 = vld [vmem:[%s0 + $0x10] sm:$0xff]
  %v17 = vld [vmem:[%s0 + $0x18] sm:$0xff]
  %20 = vst [vmem:[#allocation1] ss:$2 sm:$0xff] %v14
  %s21 = scalar_lea.vmem [#allocation1], 16
  %22 = vst [vmem:[%s21] ss:$2 sm:$0xff] %v15
  %v23 = vld.sshfl [vmem:[#allocation1] sm:$0xff pattern:$0x75316420]
  %v24 = vld.sshfl [vmem:[#allocation1 + $0x8] sm:$0xff pattern:$0x75316420]
  %v25 = vld.sshfl [vmem:[#allocation1 + $0x10] sm:$0xff pattern:$0x75316420]
  %31 = vst [vmem:[#allocation1] ss:$2 sm:$0xff] %v16
  %s32 = scalar_lea.vmem [#allocation1], 16
  %33 = vst [vmem:[%s32] ss:$2 sm:$0xff] %v17
  %v34 = vld.sshfl [vmem:[#allocation1] sm:$0xff pattern:$0x75316420]
  %v35 = vld.sshfl [vmem:[#allocation1 + $0x8] sm:$0xff pattern:$0x75316420]
  %v36 = vld.sshfl [vmem:[#allocation1 + $0x10] sm:$0xff pattern:$0x75316420]
  %40 = vst [vmem:[#allocation1] ss:$2 sm:$0xff] %v14
  %s41 = scalar_lea.vmem [#allocation1], 16
  %42 = vst [vmem:[%s41] ss:$2 sm:$0xff] %v15
  %v43 = vld.sshfl [vmem:[#allocation1] sm:$0xff pattern:$0x75316420]
  %v44 = vld.sshfl [vmem:[#allocation1 + $0x8] sm:$0xff pattern:$0x75316420]
  %v45 = vld.sshfl [vmem:[#allocation1 + $0x10] sm:$0xff pattern:$0x75316420]
  %v46 = vld.sshfl [vmem:[#allocation1 + $0x18] sm:$0xff pattern:$0x75316420]
  %47 = vrot.lane.b32.xlu0 %v43, 127
  %v48 = vpop.permute.xlu0 %47
  %49 = vrot.lane.b32.xlu0 %v44, 127
  %v50 = vpop.permute.xlu0 %49
  %51 = vrot.lane.b32.xlu0 %v45, 127
  %v52 = vpop.permute.xlu0 %51
  %53 = vrot.lane.b32.xlu0 %v46, 127
  %v54 = vpop.permute.xlu0 %53
  %vm55 = vcmask 1039360
  %v56 = vsel %vm55, %v48, %v50
  %v57 = vsel %vm55, %v50, %v52
  %v58 = vsel %vm55, %v52, %v54
  %59 = vst [vmem:[#allocation1] ss:$2 sm:$0xff] %v16
  %s60 = scalar_lea.vmem [#allocation1], 16
  %61 = vst [vmem:[%s60] ss:$2 sm:$0xff] %v17
  %v62 = vld.sshfl [vmem:[#allocation1] sm:$0xff pattern:$0x75316420]
  %v63 = vld.sshfl [vmem:[#allocation1 + $0x8] sm:$0xff pattern:$0x75316420]
  %v64 = vld.sshfl [vmem:[#allocation1 + $0x10] sm:$0xff pattern:$0x75316420]
  %v65 = vld.sshfl [vmem:[#allocation1 + $0x18] sm:$0xff pattern:$0x75316420]
  %66 = vrot.lane.b32.xlu0 %v62, 127
  %v67 = vpop.permute.xlu0 %66
  %68 = vrot.lane.b32.xlu0 %v63, 127
  %v69 = vpop.permute.xlu0 %68
  %70 = vrot.lane.b32.xlu0 %v64, 127
  %v71 = vpop.permute.xlu0 %70
  %72 = vrot.lane.b32.xlu0 %v65, 127
  %v73 = vpop.permute.xlu0 %72
  %v74 = vsel %vm55, %v67, %v69
  %v75 = vsel %vm55, %v69, %v71
  %v76 = vsel %vm55, %v71, %v73
  %77 = vst [vmem:[#allocation1] ss:$2 sm:$0xff] %v14
  %s78 = scalar_lea.vmem [#allocation1], 16
  %79 = vst [vmem:[%s78] ss:$2 sm:$0xff] %v15
  %v80 = vld.sshfl [vmem:[#allocation1] sm:$0xff pattern:$0x75316420]
  %v81 = vld.sshfl [vmem:[#allocation1 + $0x8] sm:$0xff pattern:$0x75316420]
  %v82 = vld.sshfl [vmem:[#allocation1 + $0x10] sm:$0xff pattern:$0x75316420]
  %v83 = vld.sshfl [vmem:[#allocation1 + $0x18] sm:$0xff pattern:$0x75316420]
  %84 = vrot.lane.b32.xlu0 %v80, 126
  %v85 = vpop.permute.xlu0 %84
  %86 = vrot.lane.b32.xlu0 %v81, 126
  %v87 = vpop.permute.xlu0 %86
  %88 = vrot.lane.b32.xlu0 %v82, 126
  %v89 = vpop.permute.xlu0 %88
  %90 = vrot.lane.b32.xlu0 %v83, 126
  %v91 = vpop.permute.xlu0 %90
  %vm92 = vcmask 1031168
  %v93 = vsel %vm92, %v85, %v87
  %v94 = vsel %vm92, %v87, %v89
  %v95 = vsel %vm92, %v89, %v91
  %99 = vst [vmem:[#allocation1] ss:$2 sm:$0xff] %v16
  %s100 = scalar_lea.vmem [#allocation1], 16
  %101 = vst [vmem:[%s100] ss:$2 sm:$0xff] %v17
  %v102 = vld.sshfl [vmem:[#allocation1] sm:$0xff pattern:$0x75316420]
  %v103 = vld.sshfl [vmem:[#allocation1 + $0x8] sm:$0xff pattern:$0x75316420]
  %v104 = vld.sshfl [vmem:[#allocation1 + $0x10] sm:$0xff pattern:$0x75316420]
  %v105 = vld.sshfl [vmem:[#allocation1 + $0x18] sm:$0xff pattern:$0x75316420]
  %106 = vrot.lane.b32.xlu0 %v102, 126
  %v107 = vpop.permute.xlu0 %106
  %108 = vrot.lane.b32.xlu0 %v103, 126
  %v109 = vpop.permute.xlu0 %108
  %110 = vrot.lane.b32.xlu0 %v104, 126
  %v111 = vpop.permute.xlu0 %110
  %112 = vrot.lane.b32.xlu0 %v105, 126
  %v113 = vpop.permute.xlu0 %112
  %v114 = vsel %vm92, %v107, %v109
  %v115 = vsel %vm92, %v109, %v111
  %v116 = vsel %vm92, %v111, %v113
  %120 = vst [vmem:[#allocation1] ss:$2 sm:$0xff] %v14
  %s121 = scalar_lea.vmem [#allocation1], 16
  %122 = vst [vmem:[%s121] ss:$2 sm:$0xff] %v15
  %v123 = vld.sshfl [vmem:[#allocation1] sm:$0xff pattern:$0x75316420]
  %v124 = vld.sshfl [vmem:[#allocation1 + $0x8] sm:$0xff pattern:$0x75316420]
  %v125 = vld.sshfl [vmem:[#allocation1 + $0x10] sm:$0xff pattern:$0x75316420]
  %v126 = vld.sshfl [vmem:[#allocation1 + $0x18] sm:$0xff pattern:$0x75316420]
  %127 = vrot.lane.b32.xlu0 %v123, 110
  %v128 = vpop.permute.xlu0 %127
  %129 = vrot.lane.b32.xlu0 %v124, 110
  %v130 = vpop.permute.xlu0 %129
  %131 = vrot.lane.b32.xlu0 %v125, 110
  %v132 = vpop.permute.xlu0 %131
  %133 = vrot.lane.b32.xlu0 %v126, 110
  %v134 = vpop.permute.xlu0 %133
  %vm135 = vcmask 900096
  %v136 = vsel %vm135, %v128, %v130
  %v137 = vsel %vm135, %v130, %v132
  %v138 = vsel %vm135, %v132, %v134
  %139 = vst [vmem:[#allocation1] ss:$2 sm:$0xff] %v16
  %s140 = scalar_lea.vmem [#allocation1], 16
  %141 = vst [vmem:[%s140] ss:$2 sm:$0xff] %v17
  %v142 = vld.sshfl [vmem:[#allocation1] sm:$0xff pattern:$0x75316420]
  %v143 = vld.sshfl [vmem:[#allocation1 + $0x8] sm:$0xff pattern:$0x75316420]
  %v144 = vld.sshfl [vmem:[#allocation1 + $0x10] sm:$0xff pattern:$0x75316420]
  %v145 = vld.sshfl [vmem:[#allocation1 + $0x18] sm:$0xff pattern:$0x75316420]
  %146 = vrot.lane.b32.xlu0 %v142, 110
  %v147 = vpop.permute.xlu0 %146
  %148 = vrot.lane.b32.xlu0 %v143, 110
  %v149 = vpop.permute.xlu0 %148
  %150 = vrot.lane.b32.xlu0 %v144, 110
  %v151 = vpop.permute.xlu0 %150
  %152 = vrot.lane.b32.xlu0 %v145, 110
  %v153 = vpop.permute.xlu0 %152
  %v154 = vsel %vm135, %v147, %v149
  %v155 = vsel %vm135, %v149, %v151
  %v156 = vsel %vm135, %v151, %v153
  %157 = vst [vmem:[#allocation1] ss:$2 sm:$0xff] %v14
  %s158 = scalar_lea.vmem [#allocation1], 16
  %159 = vst [vmem:[%s158] ss:$2 sm:$0xff] %v15
  %v160 = vld.sshfl [vmem:[#allocation1] sm:$0xff pattern:$0x75316420]
  %v161 = vld.sshfl [vmem:[#allocation1 + $0x8] sm:$0xff pattern:$0x75316420]
  %v162 = vld.sshfl [vmem:[#allocation1 + $0x10] sm:$0xff pattern:$0x75316420]
  %v163 = vld.sshfl [vmem:[#allocation1 + $0x18] sm:$0xff pattern:$0x75316420]
  %164 = vrot.lane.b32.xlu0 %v160, 109
  %v165 = vpop.permute.xlu0 %164
  %166 = vrot.lane.b32.xlu0 %v161, 109
  %v167 = vpop.permute.xlu0 %166
  %168 = vrot.lane.b32.xlu0 %v162, 109
  %v169 = vpop.permute.xlu0 %168
  %170 = vrot.lane.b32.xlu0 %v163, 109
  %v171 = vpop.permute.xlu0 %170
  %vm172 = vcmask 891904
  %v173 = vsel %vm172, %v165, %v167
  %v174 = vsel %vm172, %v167, %v169
  %v175 = vsel %vm172, %v169, %v171
  %179 = vst [vmem:[#allocation1] ss:$2 sm:$0xff] %v16
  %s180 = scalar_lea.vmem [#allocation1], 16
  %181 = vst [vmem:[%s180] ss:$2 sm:$0xff] %v17
  %v182 = vld.sshfl [vmem:[#allocation1] sm:$0xff pattern:$0x75316420]
  %v183 = vld.sshfl [vmem:[#allocation1 + $0x8] sm:$0xff pattern:$0x75316420]
  %v184 = vld.sshfl [vmem:[#allocation1 + $0x10] sm:$0xff pattern:$0x75316420]
  %v185 = vld.sshfl [vmem:[#allocation1 + $0x18] sm:$0xff pattern:$0x75316420]
  %186 = vrot.lane.b32.xlu0 %v182, 109
  %v187 = vpop.permute.xlu0 %186
  %188 = vrot.lane.b32.xlu0 %v183, 109
  %v189 = vpop.permute.xlu0 %188
  %190 = vrot.lane.b32.xlu0 %v184, 109
  %v191 = vpop.permute.xlu0 %190
  %192 = vrot.lane.b32.xlu0 %v185, 109
  %v193 = vpop.permute.xlu0 %192
  %v194 = vsel %vm172, %v187, %v189
  %v195 = vsel %vm172, %v189, %v191
  %v196 = vsel %vm172, %v191, %v193
  %200 = vst [vmem:[#allocation1] ss:$2 sm:$0xff] %v14
  %s201 = scalar_lea.vmem [#allocation1], 16
  %202 = vst [vmem:[%s201] ss:$2 sm:$0xff] %v15
  %v203 = vld.sshfl [vmem:[#allocation1] sm:$0xff pattern:$0x75316420]
  %v204 = vld.sshfl [vmem:[#allocation1 + $0x8] sm:$0xff pattern:$0x75316420]
  %v205 = vld.sshfl [vmem:[#allocation1 + $0x10] sm:$0xff pattern:$0x75316420]
  %v206 = vld.sshfl [vmem:[#allocation1 + $0x18] sm:$0xff pattern:$0x75316420]
  %207 = vrot.lane.b32.xlu0 %v203, 108
  %v208 = vpop.permute.xlu0 %207
  %209 = vrot.lane.b32.xlu0 %v204, 108
  %v210 = vpop.permute.xlu0 %209
  %211 = vrot.lane.b32.xlu0 %v205, 108
  %v212 = vpop.permute.xlu0 %211
  %213 = vrot.lane.b32.xlu0 %v206, 108
  %v214 = vpop.permute.xlu0 %213
  %vm215 = vcmask 883712
  %v216 = vsel %vm215, %v208, %v210
  %v217 = vsel %vm215, %v210, %v212
  %v218 = vsel %vm215, %v212, %v214
  %219 = vst [vmem:[#allocation1] ss:$2 sm:$0xff] %v16
  %s220 = scalar_lea.vmem [#allocation1], 16
  %221 = vst [vmem:[%s220] ss:$2 sm:$0xff] %v17
  %v222 = vld.sshfl [vmem:[#allocation1] sm:$0xff pattern:$0x75316420]
  %v223 = vld.sshfl [vmem:[#allocation1 + $0x8] sm:$0xff pattern:$0x75316420]
  %v224 = vld.sshfl [vmem:[#allocation1 + $0x10] sm:$0xff pattern:$0x75316420]
  %v225 = vld.sshfl [vmem:[#allocation1 + $0x18] sm:$0xff pattern:$0x75316420]
  %226 = vrot.lane.b32.xlu0 %v222, 108
  %v227 = vpop.permute.xlu0 %226
  %228 = vrot.lane.b32.xlu0 %v223, 108
  %v229 = vpop.permute.xlu0 %228
  %230 = vrot.lane.b32.xlu0 %v224, 108
  %v231 = vpop.permute.xlu0 %230
  %232 = vrot.lane.b32.xlu0 %v225, 108
  %v233 = vpop.permute.xlu0 %232
  %v234 = vsel %vm215, %v227, %v229
  %v235 = vsel %vm215, %v229, %v231
  %v236 = vsel %vm215, %v231, %v233
  %237 = vst [vmem:[#allocation1] ss:$2 sm:$0xff] %v14
  %s238 = scalar_lea.vmem [#allocation1], 16
  %239 = vst [vmem:[%s238] ss:$2 sm:$0xff] %v15
  %v240 = vld.sshfl [vmem:[#allocation1] sm:$0xff pattern:$0x75316420]
  %v241 = vld.sshfl [vmem:[#allocation1 + $0x8] sm:$0xff pattern:$0x75316420]
  %v242 = vld.sshfl [vmem:[#allocation1 + $0x10] sm:$0xff pattern:$0x75316420]
  %v243 = vld.sshfl [vmem:[#allocation1 + $0x18] sm:$0xff pattern:$0x75316420]
  %244 = vrot.lane.b32.xlu0 %v240, 92
  %v245 = vpop.permute.xlu0 %244
  %246 = vrot.lane.b32.xlu0 %v241, 92
  %v247 = vpop.permute.xlu0 %246
  %248 = vrot.lane.b32.xlu0 %v242, 92
  %v249 = vpop.permute.xlu0 %248
  %250 = vrot.lane.b32.xlu0 %v243, 92
  %v251 = vpop.permute.xlu0 %250
  %vm252 = vcmask 752640
  %v253 = vsel %vm252, %v245, %v247
  %v254 = vsel %vm252, %v247, %v249
  %v255 = vsel %vm252, %v249, %v251
  %259 = vst [vmem:[#allocation1] ss:$2 sm:$0xff] %v16
  %s260 = scalar_lea.vmem [#allocation1], 16
  %261 = vst [vmem:[%s260] ss:$2 sm:$0xff] %v17
  %v262 = vld.sshfl [vmem:[#allocation1] sm:$0xff pattern:$0x75316420]
  %v263 = vld.sshfl [vmem:[#allocation1 + $0x8] sm:$0xff pattern:$0x75316420]
  %v264 = vld.sshfl [vmem:[#allocation1 + $0x10] sm:$0xff pattern:$0x75316420]
  %v265 = vld.sshfl [vmem:[#allocation1 + $0x18] sm:$0xff pattern:$0x75316420]
  %266 = vrot.lane.b32.xlu0 %v262, 92
  %v267 = vpop.permute.xlu0 %266
  %268 = vrot.lane.b32.xlu0 %v263, 92
  %v269 = vpop.permute.xlu0 %268
  %270 = vrot.lane.b32.xlu0 %v264, 92
  %v271 = vpop.permute.xlu0 %270
  %272 = vrot.lane.b32.xlu0 %v265, 92
  %v273 = vpop.permute.xlu0 %272
  %v274 = vsel %vm252, %v267, %v269
  %v275 = vsel %vm252, %v269, %v271
  %v276 = vsel %vm252, %v271, %v273
  %280 = vst [vmem:[#allocation1] ss:$2 sm:$0xff] %v14
  %s281 = scalar_lea.vmem [#allocation1], 16
  %282 = vst [vmem:[%s281] ss:$2 sm:$0xff] %v15
  %v283 = vld.sshfl [vmem:[#allocation1] sm:$0xff pattern:$0x75316420]
  %v284 = vld.sshfl [vmem:[#allocation1 + $0x8] sm:$0xff pattern:$0x75316420]
  %v285 = vld.sshfl [vmem:[#allocation1 + $0x10] sm:$0xff pattern:$0x75316420]
  %v286 = vld.sshfl [vmem:[#allocation1 + $0x18] sm:$0xff pattern:$0x75316420]
  %287 = vrot.lane.b32.xlu0 %v283, 91
  %v288 = vpop.permute.xlu0 %287
  %289 = vrot.lane.b32.xlu0 %v284, 91
  %v290 = vpop.permute.xlu0 %289
  %291 = vrot.lane.b32.xlu0 %v285, 91
  %v292 = vpop.permute.xlu0 %291
  %293 = vrot.lane.b32.xlu0 %v286, 91
  %v294 = vpop.permute.xlu0 %293
  %vm295 = vcmask 744448
  %v296 = vsel %vm295, %v288, %v290
  %v297 = vsel %vm295, %v290, %v292
  %v298 = vsel %vm295, %v292, %v294
  %299 = vst [vmem:[#allocation1] ss:$2 sm:$0xff] %v16
  %s300 = scalar_lea.vmem [#allocation1], 16
  %301 = vst [vmem:[%s300] ss:$2 sm:$0xff] %v17
  %v302 = vld.sshfl [vmem:[#allocation1] sm:$0xff pattern:$0x75316420]
  %v303 = vld.sshfl [vmem:[#allocation1 + $0x8] sm:$0xff pattern:$0x75316420]
  %v304 = vld.sshfl [vmem:[#allocation1 + $0x10] sm:$0xff pattern:$0x75316420]
  %v305 = vld.sshfl [vmem:[#allocation1 + $0x18] sm:$0xff pattern:$0x75316420]
  %306 = vrot.lane.b32.xlu0 %v302, 91
  %v307 = vpop.permute.xlu0 %306
  %308 = vrot.lane.b32.xlu0 %v303, 91
  %v309 = vpop.permute.xlu0 %308
  %310 = vrot.lane.b32.xlu0 %v304, 91
  %v311 = vpop.permute.xlu0 %310
  %312 = vrot.lane.b32.xlu0 %v305, 91
  %v313 = vpop.permute.xlu0 %312
  %v314 = vsel %vm295, %v307, %v309
  %v315 = vsel %vm295, %v309, %v311
  %v316 = vsel %vm295, %v311, %v313
  %317 = vst [vmem:[#allocation1] ss:$2 sm:$0xff] %v14
  %s318 = scalar_lea.vmem [#allocation1], 16
  %319 = vst [vmem:[%s318] ss:$2 sm:$0xff] %v15
  %v320 = vld.sshfl [vmem:[#allocation1] sm:$0xff pattern:$0x75316420]
  %v321 = vld.sshfl [vmem:[#allocation1 + $0x8] sm:$0xff pattern:$0x75316420]
  %v322 = vld.sshfl [vmem:[#allocation1 + $0x10] sm:$0xff pattern:$0x75316420]
  %v323 = vld.sshfl [vmem:[#allocation1 + $0x18] sm:$0xff pattern:$0x75316420]
  %324 = vrot.lane.b32.xlu0 %v320, 90
  %v325 = vpop.permute.xlu0 %324
  %326 = vrot.lane.b32.xlu0 %v321, 90
  %v327 = vpop.permute.xlu0 %326
  %328 = vrot.lane.b32.xlu0 %v322, 90
  %v329 = vpop.permute.xlu0 %328
  %330 = vrot.lane.b32.xlu0 %v323, 90
  %v331 = vpop.permute.xlu0 %330
  %vm332 = vcmask 736256
  %v333 = vsel %vm332, %v325, %v327
  %v334 = vsel %vm332, %v327, %v329
  %v335 = vsel %vm332, %v329, %v331
  %336 = vst [vmem:[#allocation1] ss:$2 sm:$0xff] %v16
  %s337 = scalar_lea.vmem [#allocation1], 16
  %338 = vst [vmem:[%s337] ss:$2 sm:$0xff] %v17
  %v339 = vld.sshfl [vmem:[#allocation1] sm:$0xff pattern:$0x75316420]
  %v340 = vld.sshfl [vmem:[#allocation1 + $0x8] sm:$0xff pattern:$0x75316420]
  %v341 = vld.sshfl [vmem:[#allocation1 + $0x10] sm:$0xff pattern:$0x75316420]
  %v342 = vld.sshfl [vmem:[#allocation1 + $0x18] sm:$0xff pattern:$0x75316420]
  %343 = vrot.lane.b32.xlu0 %v339, 90
  %v344 = vpop.permute.xlu0 %343
  %345 = vrot.lane.b32.xlu0 %v340, 90
  %v346 = vpop.permute.xlu0 %345
  %347 = vrot.lane.b32.xlu0 %v341, 90
  %v348 = vpop.permute.xlu0 %347
  %349 = vrot.lane.b32.xlu0 %v342, 90
  %v350 = vpop.permute.xlu0 %349
  %v351 = vsel %vm332, %v344, %v346
  %v352 = vsel %vm332, %v346, %v348
  %v353 = vsel %vm332, %v348, %v350
  %v354 = vrot.slane %v56, 4
  %v355 = vrot.slane %v57, 4
  %v356 = vrot.slane %v58, 4
  %v357 = vrot.slane %v74, 4
  %v358 = vrot.slane %v75, 4
  %v359 = vrot.slane %v76, 4
  %v366 = vrot.slane %v136, 4
  %v367 = vrot.slane %v137, 4
  %v368 = vrot.slane %v138, 4
  %v369 = vrot.slane %v154, 4
  %v370 = vrot.slane %v155, 4
  %v371 = vrot.slane %v156, 4
  %v378 = vrot.slane %v216, 4
  %v379 = vrot.slane %v217, 4
  %v380 = vrot.slane %v218, 4
  %v381 = vrot.slane %v234, 4
  %v382 = vrot.slane %v235, 4
  %v383 = vrot.slane %v236, 4
  %v390 = vrot.slane %v296, 4
  %v391 = vrot.slane %v297, 4
  %v392 = vrot.slane %v298, 4
  %v393 = vrot.slane %v314, 4
  %v394 = vrot.slane %v315, 4
  %v395 = vrot.slane %v316, 4
  %vm402 = vcmask 1043456
  %v403 = vsel %vm402, %v23, %v354
  %v404 = vsel %vm402, %v24, %v355
  %v405 = vsel %vm402, %v25, %v356
  %v406 = vsel %vm402, %v34, %v357
  %v407 = vsel %vm402, %v35, %v358
  %v408 = vsel %vm402, %v36, %v359
  %v409 = vsel %vm402, %v93, %v366
  %v410 = vsel %vm402, %v94, %v367
  %v411 = vsel %vm402, %v95, %v368
  %v412 = vsel %vm402, %v114, %v369
  %v413 = vsel %vm402, %v115, %v370
  %v414 = vsel %vm402, %v116, %v371
  %v415 = vsel %vm402, %v173, %v378
  %v416 = vsel %vm402, %v174, %v379
  %v417 = vsel %vm402, %v175, %v380
  %v418 = vsel %vm402, %v194, %v381
  %v419 = vsel %vm402, %v195, %v382
  %v420 = vsel %vm402, %v196, %v383
  %v421 = vsel %vm402, %v253, %v390
  %v422 = vsel %vm402, %v254, %v391
  %v423 = vsel %vm402, %v255, %v392
  %v424 = vsel %vm402, %v274, %v393
  %v425 = vsel %vm402, %v275, %v394
  %v426 = vsel %vm402, %v276, %v395
  %v427 = vld [vmem:[%s1] sm:$0xff]
  %v428 = vld [vmem:[%s2] sm:$0xff]
  %430 = vset.pattern.permute.xlu0 0
  %431 = vperm.xlu0 %430, %v428
  %v432 = vpop.permute.xlu0 %431
  %vm434 = vcmask 293888
  %v436 = vsel %vm434, %v427, 0
  %v438 = vsel %vm402, %v333, 0
  %v440 = vsel %vm402, %v334, 0
  %v442 = vsel %vm402, %v335, 0
  %v444 = vsel %vm402, %v351, 0
  %v446 = vsel %vm402, %v352, 0
  %v448 = vsel %vm402, %v353, 0
  %450 = vmatpush.msra.mxu0 0.0
  %451 = vmatpush.msra.mxu0 0.0
  %452 = vmatpush.msra.mxu0 0.0
  %453 = vmatpush.msra.mxu0 0.0
  %454 = vmatpush.msra.mxu0 0.0
  %455 = vmatpush.msra.mxu0 0.0
  %456 = vmatpush.msra.mxu0 0.0
  %457 = vmatpush.msra.mxu0 0.0
  %458 = vmatpush.msra.mxu0 0.0
  %459 = vmatpush.msra.mxu0 0.0
  %460 = vmatpush.msra.mxu0 0.0
  %461 = vmatpush.msra.mxu0 %v438
  %462 = vmatpush.msra.mxu0 %v421
  %463 = vmatpush.msra.mxu0 %v415
  %464 = vmatpush.msra.mxu0 %v409
  %465 = vmatpush.msra.mxu0 %v403
  %466 = vmatmul.f32.gmra.mxu0 %v436
  %v467 = vpop.f32.mrf.mxu0
  %v468 = vadd.f32 %v432, %v467
  %469 = vdwg.mxu0
  %470 = vmatpush.msra.mxu0 0.0
  %471 = vmatpush.msra.mxu0 0.0
  %472 = vmatpush.msra.mxu0 0.0
  %473 = vmatpush.msra.mxu0 0.0
  %474 = vmatpush.msra.mxu0 0.0
  %475 = vmatpush.msra.mxu0 0.0
  %476 = vmatpush.msra.mxu0 0.0
  %477 = vmatpush.msra.mxu0 0.0
  %478 = vmatpush.msra.mxu0 0.0
  %479 = vmatpush.msra.mxu0 0.0
  %480 = vmatpush.msra.mxu0 0.0
  %481 = vmatpush.msra.mxu0 %v440
  %482 = vmatpush.msra.mxu0 %v422
  %483 = vmatpush.msra.mxu0 %v416
  %484 = vmatpush.msra.mxu0 %v410
  %485 = vmatpush.msra.mxu0 %v404
  %486 = vmatmul.f32.gmra.mxu0 %v436
  %v487 = vpop.f32.mrf.mxu0
  %v488 = vadd.f32 %v432, %v487
  %489 = vdwg.mxu0
  %490 = vmatpush.msra.mxu0 0.0
  %491 = vmatpush.msra.mxu0 0.0
  %492 = vmatpush.msra.mxu0 0.0
  %493 = vmatpush.msra.mxu0 0.0
  %494 = vmatpush.msra.mxu0 0.0
  %495 = vmatpush.msra.mxu0 0.0
  %496 = vmatpush.msra.mxu0 0.0
  %497 = vmatpush.msra.mxu0 0.0
  %498 = vmatpush.msra.mxu0 0.0
  %499 = vmatpush.msra.mxu0 0.0
  %500 = vmatpush.msra.mxu0 0.0
  %501 = vmatpush.msra.mxu0 %v442
  %502 = vmatpush.msra.mxu0 %v423
  %503 = vmatpush.msra.mxu0 %v417
  %504 = vmatpush.msra.mxu0 %v411
  %505 = vmatpush.msra.mxu0 %v405
  %506 = vmatmul.f32.gmra.mxu0 %v436
  %v507 = vpop.f32.mrf.mxu0
  %v508 = vadd.f32 %v432, %v507
  %509 = vdwg.mxu0
  %510 = vmatpush.msra.mxu0 0.0
  %511 = vmatpush.msra.mxu0 0.0
  %512 = vmatpush.msra.mxu0 0.0
  %513 = vmatpush.msra.mxu0 0.0
  %514 = vmatpush.msra.mxu0 0.0
  %515 = vmatpush.msra.mxu0 0.0
  %516 = vmatpush.msra.mxu0 0.0
  %517 = vmatpush.msra.mxu0 0.0
  %518 = vmatpush.msra.mxu0 0.0
  %519 = vmatpush.msra.mxu0 0.0
  %520 = vmatpush.msra.mxu0 0.0
  %521 = vmatpush.msra.mxu0 %v444
  %522 = vmatpush.msra.mxu0 %v424
  %523 = vmatpush.msra.mxu0 %v418
  %524 = vmatpush.msra.mxu0 %v412
  %525 = vmatpush.msra.mxu0 %v406
  %526 = vmatmul.f32.gmra.mxu0 %v436
  %v527 = vpop.f32.mrf.mxu0
  %v528 = vadd.f32 %v432, %v527
  %529 = vdwg.mxu0
  %530 = vmatpush.msra.mxu0 0.0
  %531 = vmatpush.msra.mxu0 0.0
  %532 = vmatpush.msra.mxu0 0.0
  %533 = vmatpush.msra.mxu0 0.0
  %534 = vmatpush.msra.mxu0 0.0
  %535 = vmatpush.msra.mxu0 0.0
  %536 = vmatpush.msra.mxu0 0.0
  %537 = vmatpush.msra.mxu0 0.0
  %538 = vmatpush.msra.mxu0 0.0
  %539 = vmatpush.msra.mxu0 0.0
  %540 = vmatpush.msra.mxu0 0.0
  %541 = vmatpush.msra.mxu0 %v446
  %542 = vmatpush.msra.mxu0 %v425
  %543 = vmatpush.msra.mxu0 %v419
  %544 = vmatpush.msra.mxu0 %v413
  %545 = vmatpush.msra.mxu0 %v407
  %546 = vmatmul.f32.gmra.mxu0 %v436
  %v547 = vpop.f32.mrf.mxu0
  %v548 = vadd.f32 %v432, %v547
  %549 = vdwg.mxu0
  %550 = vmatpush.msra.mxu0 0.0
  %551 = vmatpush.msra.mxu0 0.0
  %552 = vmatpush.msra.mxu0 0.0
  %553 = vmatpush.msra.mxu0 0.0
  %554 = vmatpush.msra.mxu0 0.0
  %555 = vmatpush.msra.mxu0 0.0
  %556 = vmatpush.msra.mxu0 0.0
  %557 = vmatpush.msra.mxu0 0.0
  %558 = vmatpush.msra.mxu0 0.0
  %559 = vmatpush.msra.mxu0 0.0
  %560 = vmatpush.msra.mxu0 0.0
  %561 = vmatpush.msra.mxu0 %v448
  %562 = vmatpush.msra.mxu0 %v426
  %563 = vmatpush.msra.mxu0 %v420
  %564 = vmatpush.msra.mxu0 %v414
  %565 = vmatpush.msra.mxu0 %v408
  %566 = vmatmul.f32.gmra.mxu0 %v436
  %v567 = vpop.f32.mrf.mxu0
  %v568 = vadd.f32 %v432, %v567
  %569 = vdwg.mxu0
  %vm570 = vcmp.ge.f32.partialorder %v468, 0.0
  %vm571 = vcmp.ge.f32.partialorder %v488, 0.0
  %vm572 = vcmp.ge.f32.partialorder %v508, 0.0
  %vm573 = vcmp.ge.f32.partialorder %v528, 0.0
  %vm574 = vcmp.ge.f32.partialorder %v548, 0.0
  %vm575 = vcmp.ge.f32.partialorder %v568, 0.0
  %v576 = vmul.f32 %v468, 0.1
  %v577 = vmul.f32 %v488, 0.1
  %v578 = vmul.f32 %v508, 0.1
  %v579 = vmul.f32 %v528, 0.1
  %v580 = vmul.f32 %v548, 0.1
  %v581 = vmul.f32 %v568, 0.1
  %v582 = vsel %vm570, %v468, %v576
  %v583 = vsel %vm571, %v488, %v577
  %v584 = vsel %vm572, %v508, %v578
  %v585 = vsel %vm573, %v528, %v579
  %v586 = vsel %vm574, %v548, %v580
  %v587 = vsel %vm575, %v568, %v581
  %588 = vst [vmem:[%s3] sm:$0xff] %v582
  %589 = vst [vmem:[%s3 + $0x8] sm:$0xff] %v583
  %590 = vst [vmem:[%s3 + $0x10] sm:$0xff] %v584
  %s591 = scalar_lea.vmem %s3, 24
  %592 = vst [vmem:[%s591] sm:$0xff] %v585
  %593 = vst [vmem:[%s591 + $0x8] sm:$0xff] %v586
  %594 = vst [vmem:[%s591 + $0x10] sm:$0xff] %v587
  // Predicated region
  $region14: #{cbl_forward.1} parent=0 // pred_check
    _
  $region15: #{cbl_forward.1} parent=0 // pred_check_branch
    %596 = sbr.rel (0) target = $region17
  $region16: #{cbl_forward.1} parent=0 // pred_region
    _
  $region17: #{cbl_forward.1} parent=0 // pred_fallthru
    _
  // Predicated region
  $region18: #{cbl_forward.1} parent=0 // pred_check
    _
  $region19: #{cbl_forward.1} parent=0 // pred_check_branch
    %598 = sbr.rel (0) target = $region21
  $region20: #{cbl_forward.1} parent=0 // pred_region
    _
  $region21: #{cbl_forward.1} parent=0 // pred_fallthru
    _

</llo_original>
